<compile_context>
chip_gen: v7x
topology: tpu7x:2x2x1
jax: 0.10.0
libtpu: 0.0.40
codegen_flags: <defaults>
</compile_context>

<pallas_src>
import jax
import jax.numpy as jnp
from jax.experimental import pallas as pl
from jax.experimental.pallas import tpu as pltpu


def gcnfction_kernel(x_ref, m_ref, k1_ref, b1_ref, k2_ref, b2_ref, out_ref):
    # x_ref: (tb, D) lane-dense rows, D = J*F = 256.
    x = x_ref[...].astype(jnp.float32)

    # ---- LayerNorm over each 32-feature (per-joint) block, eps = 1e-5 ----
    # Per-joint mean / variance computed lane-dense with the block-averaging matrix
    # M = kron(I_J, ones(F,F)/F); two-pass (centered) variance for accuracy.
    mean = jnp.dot(x, m_ref[...], preferred_element_type=jnp.float32)
    c = x - mean
    var = jnp.dot(c * c, m_ref[...], preferred_element_type=jnp.float32)
    n = c * jax.lax.rsqrt(var + 1e-5)
    # (gamma folded into K1's rows, beta folded into b1_eff -- done in the wrapper)

    cd = k1_ref.dtype

    # ---- AGCN #1 (L1 @ h @ W1^T + b1) as one 256x256 operator + LeakyReLU(0.1) ----
    # Dropout(0.2) -> identity (eval mode).
    h = jnp.dot(n.astype(cd), k1_ref[...], preferred_element_type=jnp.float32)
    h = h + b1_ref[...]
    h = jnp.where(h > 0, h, 0.1 * h)

    # ---- AGCN #2 + LeakyReLU(0.1)  (Dropout -> identity) ----
    h = jnp.dot(h.astype(cd), k2_ref[...], preferred_element_type=jnp.float32)
    h = h + b2_ref[...]
    h = jnp.where(h > 0, h, 0.1 * h)

    # ---- residual (with the ORIGINAL, pre-LayerNorm input) ----
    out_ref[...] = (h + x).astype(out_ref.dtype)


def gcnfction_forward(x, gamma, beta, adj1, w1, b1, adj2, w2, b2,
                      tb=None, matmul_dtype=jnp.float32):
    B, J, F = x.shape
    D = J * F
    f32 = jnp.float32
    hp = jax.lax.Precision.HIGHEST

    # ---- grid-invariant preprocessing (hoisted out of the kernel) ----
    def laplacian(adj):
        a = adj.astype(f32)
        return a / (jnp.sum(a, axis=1, keepdims=True) + 1e-5)

    L1 = laplacian(adj1)
    L2 = laplacian(adj2)

    # Fold each AGCN layer into one (D, D) operator on row-flattened samples:
    #   vec_row(L H W^T) = vec_row(H) @ kron(L^T, W^T)
    K1 = jnp.kron(L1.T, w1.astype(f32).T)            # (D, D)
    K2 = jnp.kron(L2.T, w2.astype(f32).T)            # (D, D)
    b1_t = jnp.tile(b1.astype(f32), J)                # (D,)
    b2_t = jnp.tile(b2.astype(f32), J)

    # Fold the LayerNorm affine into layer 1:
    #   (n*gamma + beta) @ K1 + b1 == n @ (diag(gamma_t) K1) + (beta_t @ K1 + b1_t)
    gamma_t = jnp.tile(gamma.astype(f32), J)
    beta_t = jnp.tile(beta.astype(f32), J)
    K1_eff = gamma_t[:, None] * K1
    b1_eff = b1_t + jnp.dot(beta_t, K1, precision=hp)

    # Lane-dense per-joint averaging matrix for LayerNorm statistics.
    M = jnp.kron(jnp.eye(J, dtype=f32), jnp.full((F, F), 1.0 / F, dtype=f32))

    K1_eff = K1_eff.astype(matmul_dtype)
    K2m = K2.astype(matmul_dtype)

    # ---- lane-dense I/O: (B, J, F) -> (B, J*F) is a free reinterpretation ----
    x2d = x.reshape(B, D)

    # ---- batch tile: big blocks (~1 MB), multiple of 8 (or == B); no padding copy ----
    if tb is None:
        if B <= 16:
            tb = B                                   # block dim == full dim (allowed)
        else:
            tb = int(max(8, min(1024, (pl.cdiv(B, 2) // 8) * 8)))
    nb = pl.cdiv(B, tb)

    out = pl.pallas_call(
        gcnfction_kernel,
        out_shape=jax.ShapeDtypeStruct((B, D), x.dtype),
        grid=(nb,),
        in_specs=[
            pl.BlockSpec((tb, D), lambda i: (i, 0)),     # x rows (lane-dense)
            pl.BlockSpec((D, D), lambda i: (0, 0)),      # M  (LN block-averaging)
            pl.BlockSpec((D, D), lambda i: (0, 0)),      # K1_eff (L1, W1, gamma folded)
            pl.BlockSpec((1, D), lambda i: (0, 0)),      # b1_eff (b1, beta folded)
            pl.BlockSpec((D, D), lambda i: (0, 0)),      # K2 (L2, W2 folded)
            pl.BlockSpec((1, D), lambda i: (0, 0)),      # b2 tiled
        ],
        out_specs=pl.BlockSpec((tb, D), lambda i: (i, 0)),
        compiler_params=pltpu.CompilerParams(
            dimension_semantics=("parallel",)),
    )(x2d, M, K1_eff, b1_eff.reshape(1, D), K2m, b2_t.reshape(1, D))

    return out.reshape(B, J, F)


def reference_forward(x, gamma, beta, adj1, w1, b1, adj2, w2, b2):
    """Pure-JAX reference mirroring the PyTorch forward (eval mode)."""
    hp = jax.lax.Precision.HIGHEST
    xf = x.astype(jnp.float32)
    mean = jnp.mean(xf, axis=-1, keepdims=True)
    var = jnp.mean((xf - mean) ** 2, axis=-1, keepdims=True)
    h = (xf - mean) / jnp.sqrt(var + 1e-5) * gamma + beta

    def agcn(h, adj, w, b):
        d = jnp.sum(adj, axis=1, keepdims=True) + 1e-5
        L = adj / d
        m = jnp.einsum("jk,bkf->bjf", L, h, precision=hp)
        return jnp.einsum("bjf,of->bjo", m, w, precision=hp) + b

    h = agcn(h, adj1, w1, b1)
    h = jnp.where(h > 0, h, 0.1 * h)
    h = agcn(h, adj2, w2, b2)
    h = jnp.where(h > 0, h, 0.1 * h)
    return h + xf


if __name__ == "__main__":
    J, F = 8, 32   # num_joint, features  (D = J*F = 256 lanes)

    key = jax.random.PRNGKey(0)
    kx, kg, kb, kw1, kb1, kw2, kb2, ka1, ka2, kx2 = jax.random.split(key, 10)

    # LayerNorm params (non-trivial, to exercise the gamma/beta fold)
    gamma = 1.0 + 0.1 * jax.random.normal(kg, (F,), jnp.float32)
    beta = 0.1 * jax.random.normal(kb, (F,), jnp.float32)

    # AGCN params: adj init ~ eye (+ small perturbation so normalization matters),
    # Linear ~ U(-1/sqrt(F), 1/sqrt(F))
    bound = 1.0 / jnp.sqrt(jnp.float32(F))
    adj1 = jnp.eye(J, dtype=jnp.float32) + 0.01 * jax.random.normal(ka1, (J, J), jnp.float32)
    w1 = jax.random.uniform(kw1, (F, F), jnp.float32, -bound, bound)
    b1 = jax.random.uniform(kb1, (F,), jnp.float32, -bound, bound)
    adj2 = jnp.eye(J, dtype=jnp.float32) + 0.01 * jax.random.normal(ka2, (J, J), jnp.float32)
    w2 = jax.random.uniform(kw2, (F, F), jnp.float32, -bound, bound)
    b2 = jax.random.uniform(kb2, (F,), jnp.float32, -bound, bound)

    # Case 1: tiny batch (B=2 -> tb=B, single grid step), f32 operators.
    B = 2
    x = jax.random.normal(kx, (B, J, F), dtype=jnp.float32)
    out = jax.block_until_ready(
        gcnfction_forward(x, gamma, beta, adj1, w1, b1, adj2, w2, b2))
    ref = reference_forward(x, gamma, beta, adj1, w1, b1, adj2, w2, b2)
    assert out.shape == (B, J, F)
    assert jnp.allclose(out, ref, atol=1e-3, rtol=1e-3), (
        f"max abs err {float(jnp.max(jnp.abs(out - ref)))}")

    # Case 2: B=20 -> tb=8, grid=3 with a partial last block (bounds-masked, no padding copy).
    B2 = 20
    x2 = jax.random.normal(kx2, (B2, J, F), dtype=jnp.float32)
    out2 = jax.block_until_ready(
        gcnfction_forward(x2, gamma, beta, adj1, w1, b1, adj2, w2, b2))
    ref2 = reference_forward(x2, gamma, beta, adj1, w1, b1, adj2, w2, b2)
    assert out2.shape == (B2, J, F)
    assert jnp.allclose(out2, ref2, atol=1e-3, rtol=1e-3), (
        f"max abs err {float(jnp.max(jnp.abs(out2 - ref2)))}")

    # Case 3: bf16 MXU operands for the 256x256 operators (v6e/v7x fast path), loose tol.
    out3 = jax.block_until_ready(
        gcnfction_forward(x2, gamma, beta, adj1, w1, b1, adj2, w2, b2,
                          matmul_dtype=jnp.bfloat16))
    assert jnp.allclose(out3, ref2, atol=5e-2, rtol=5e-2), (
        f"max abs err (bf16) {float(jnp.max(jnp.abs(out3 - ref2)))}")

    print("KERNEL_OK")
</pallas_src>

<mosaic_0001>
module attributes {stable_mosaic.version = 11 : i64} {
  func.func @gcnfction_kernel(%arg0: i32, %arg1: memref<2x256xf32, #tpu.memory_space<vmem>>, %arg2: memref<256x256xf32, #tpu.memory_space<vmem>>, %arg3: memref<256x256xf32, #tpu.memory_space<vmem>>, %arg4: memref<1x256xf32, #tpu.memory_space<vmem>>, %arg5: memref<256x256xf32, #tpu.memory_space<vmem>>, %arg6: memref<1x256xf32, #tpu.memory_space<vmem>>, %arg7: memref<2x256xf32, #tpu.memory_space<vmem>>) attributes {dimension_semantics = [#tpu.dimension_semantics<parallel>], iteration_bounds = array<i64: 1>, scalar_prefetch = 0 : i64, scratch_operands = 0 : i64, tpu.core_type = #tpu.core_type<tc>, window_params = [{transform_indices = @transform_0, window_bounds = array<i64: 2, 256>}, {pipeline_mode = #tpu.pipeline_mode<synchronous>, transform_indices = @transform_1, window_bounds = array<i64: 256, 256>}, {pipeline_mode = #tpu.pipeline_mode<synchronous>, transform_indices = @transform_2, window_bounds = array<i64: 256, 256>}, {pipeline_mode = #tpu.pipeline_mode<synchronous>, transform_indices = @transform_3, window_bounds = array<i64: 1, 256>}, {pipeline_mode = #tpu.pipeline_mode<synchronous>, transform_indices = @transform_4, window_bounds = array<i64: 256, 256>}, {pipeline_mode = #tpu.pipeline_mode<synchronous>, transform_indices = @transform_5, window_bounds = array<i64: 1, 256>}, {transform_indices = @transform_6, window_bounds = array<i64: 2, 256>}]} {
    %c0 = arith.constant 0 : index
    %c0_0 = arith.constant 0 : index
    %0 = vector.load %arg1[%c0, %c0_0] : memref<2x256xf32, #tpu.memory_space<vmem>>, vector<2x256xf32>
    %c0_1 = arith.constant 0 : index
    %c0_2 = arith.constant 0 : index
    %1 = vector.load %arg2[%c0_1, %c0_2] : memref<256x256xf32, #tpu.memory_space<vmem>>, vector<256x256xf32>
    %cst = arith.constant dense<0.000000e+00> : vector<2x256xf32>
    %2 = tpu.matmul %0, %1, %cst {dimension_numbers = #tpu.dot_dimension_numbers<[1], [0], [0], [1], [0, 0, 1, 1], [], []>} : vector<2x256xf32>, vector<256x256xf32>, vector<2x256xf32> -> vector<2x256xf32>
    %3 = arith.subf %0, %2 : vector<2x256xf32>
    %4 = arith.mulf %3, %3 : vector<2x256xf32>
    %c0_3 = arith.constant 0 : index
    %c0_4 = arith.constant 0 : index
    %5 = vector.load %arg2[%c0_3, %c0_4] : memref<256x256xf32, #tpu.memory_space<vmem>>, vector<256x256xf32>
    %cst_5 = arith.constant dense<0.000000e+00> : vector<2x256xf32>
    %6 = tpu.matmul %4, %5, %cst_5 {dimension_numbers = #tpu.dot_dimension_numbers<[1], [0], [0], [1], [0, 0, 1, 1], [], []>} : vector<2x256xf32>, vector<256x256xf32>, vector<2x256xf32> -> vector<2x256xf32>
    %cst_6 = arith.constant 9.99999974E-6 : f32
    %7 = vector.broadcast %cst_6 : f32 to vector<2x256xf32>
    %8 = arith.addf %6, %7 : vector<2x256xf32>
    %9 = math.rsqrt %8 : vector<2x256xf32>
    %10 = arith.mulf %3, %9 : vector<2x256xf32>
    %c0_7 = arith.constant 0 : index
    %c0_8 = arith.constant 0 : index
    %11 = vector.load %arg3[%c0_7, %c0_8] : memref<256x256xf32, #tpu.memory_space<vmem>>, vector<256x256xf32>
    %cst_9 = arith.constant dense<0.000000e+00> : vector<2x256xf32>
    %12 = tpu.matmul %10, %11, %cst_9 {dimension_numbers = #tpu.dot_dimension_numbers<[1], [0], [0], [1], [0, 0, 1, 1], [], []>} : vector<2x256xf32>, vector<256x256xf32>, vector<2x256xf32> -> vector<2x256xf32>
    %c0_10 = arith.constant 0 : index
    %c0_11 = arith.constant 0 : index
    %13 = vector.load %arg4[%c0_10, %c0_11] : memref<1x256xf32, #tpu.memory_space<vmem>>, vector<1x256xf32>
    %14 = vector.broadcast %13 : vector<1x256xf32> to vector<2x256xf32>
    %15 = arith.addf %12, %14 : vector<2x256xf32>
    %cst_12 = arith.constant 0.000000e+00 : f32
    %16 = vector.broadcast %cst_12 : f32 to vector<2x256xf32>
    %17 = arith.cmpf ogt, %15, %16 : vector<2x256xf32>
    %cst_13 = arith.constant 1.000000e-01 : f32
    %18 = vector.broadcast %cst_13 : f32 to vector<2x256xf32>
    %19 = arith.mulf %18, %15 : vector<2x256xf32>
    %20 = arith.select %17, %15, %19 : vector<2x256xi1>, vector<2x256xf32>
    %c0_14 = arith.constant 0 : index
    %c0_15 = arith.constant 0 : index
    %21 = vector.load %arg5[%c0_14, %c0_15] : memref<256x256xf32, #tpu.memory_space<vmem>>, vector<256x256xf32>
    %cst_16 = arith.constant dense<0.000000e+00> : vector<2x256xf32>
    %22 = tpu.matmul %20, %21, %cst_16 {dimension_numbers = #tpu.dot_dimension_numbers<[1], [0], [0], [1], [0, 0, 1, 1], [], []>} : vector<2x256xf32>, vector<256x256xf32>, vector<2x256xf32> -> vector<2x256xf32>
    %c0_17 = arith.constant 0 : index
    %c0_18 = arith.constant 0 : index
    %23 = vector.load %arg6[%c0_17, %c0_18] : memref<1x256xf32, #tpu.memory_space<vmem>>, vector<1x256xf32>
    %24 = vector.broadcast %23 : vector<1x256xf32> to vector<2x256xf32>
    %25 = arith.addf %22, %24 : vector<2x256xf32>
    %cst_19 = arith.constant 0.000000e+00 : f32
    %26 = vector.broadcast %cst_19 : f32 to vector<2x256xf32>
    %27 = arith.cmpf ogt, %25, %26 : vector<2x256xf32>
    %cst_20 = arith.constant 1.000000e-01 : f32
    %28 = vector.broadcast %cst_20 : f32 to vector<2x256xf32>
    %29 = arith.mulf %28, %25 : vector<2x256xf32>
    %30 = arith.select %27, %25, %29 : vector<2x256xi1>, vector<2x256xf32>
    %31 = arith.addf %30, %0 : vector<2x256xf32>
    %c0_21 = arith.constant 0 : index
    %c0_22 = arith.constant 0 : index
    %32 = vector.load %arg7[%c0_21, %c0_22] : memref<2x256xf32, #tpu.memory_space<vmem>>, vector<2x256xf32>
    tpu.vector_store %arg7[%c0_21, %c0_22], %31 {strides = array<i32>} : memref<2x256xf32, #tpu.memory_space<vmem>>, vector<2x256xf32>,
    return
  }
  func.func @transform_0(%arg0: i32) -> (i32, i32) {
    %c0_i32 = arith.constant 0 : i32
    %c0_i32_0 = arith.constant 0 : i32
    return %arg0, %c0_i32 : i32, i32
  }
  func.func @transform_1(%arg0: i32) -> (i32, i32) {
    %c0_i32 = arith.constant 0 : i32
    %c0_i32_0 = arith.constant 0 : i32
    %c0_i32_1 = arith.constant 0 : i32
    return %c0_i32, %c0_i32_0 : i32, i32
  }
  func.func @transform_2(%arg0: i32) -> (i32, i32) {
    %c0_i32 = arith.constant 0 : i32
    %c0_i32_0 = arith.constant 0 : i32
    %c0_i32_1 = arith.constant 0 : i32
    return %c0_i32, %c0_i32_0 : i32, i32
  }
  func.func @transform_3(%arg0: i32) -> (i32, i32) {
    %c0_i32 = arith.constant 0 : i32
    %c0_i32_0 = arith.constant 0 : i32
    %c0_i32_1 = arith.constant 0 : i32
    return %c0_i32, %c0_i32_0 : i32, i32
  }
  func.func @transform_4(%arg0: i32) -> (i32, i32) {
    %c0_i32 = arith.constant 0 : i32
    %c0_i32_0 = arith.constant 0 : i32
    %c0_i32_1 = arith.constant 0 : i32
    return %c0_i32, %c0_i32_0 : i32, i32
  }
  func.func @transform_5(%arg0: i32) -> (i32, i32) {
    %c0_i32 = arith.constant 0 : i32
    %c0_i32_0 = arith.constant 0 : i32
    %c0_i32_1 = arith.constant 0 : i32
    return %c0_i32, %c0_i32_0 : i32, i32
  }
  func.func @transform_6(%arg0: i32) -> (i32, i32) {
    %c0_i32 = arith.constant 0 : i32
    %c0_i32_0 = arith.constant 0 : i32
    return %arg0, %c0_i32 : i32, i32
  }
}

</mosaic_0001>

<llo_original>
// kernel: tpu_custom_call.1
$region0: #{tpu_custom_call.1}
  #allocation0 [shape = 'u32[]', space=smem, size = 0x4, offset = 0x4, fixed_abs, tag = 'smem constant byte address 0x4 - core index']
  #allocation1 [shape = 'u32[144,128]{1,0:T(1,128)}', space=vmem, size = 0x12000, scoped, tag = 'internal scratch']
  %s0 = inlined_call_operand.hbm [shape: f32[2,256], index: 0, kind: input, shape index: {}]
  %s1 = inlined_call_operand.hbm [shape: f32[256,256], index: 1, kind: input, shape index: {}]
  %s2 = inlined_call_operand.hbm [shape: f32[256,256], index: 2, kind: input, shape index: {}]
  %s3 = inlined_call_operand.vmem [shape: f32[1,256], index: 3, kind: input, shape index: {}]
  %s4 = inlined_call_operand.hbm [shape: f32[256,256], index: 4, kind: input, shape index: {}]
  %s5 = inlined_call_operand.vmem [shape: f32[1,256], index: 5, kind: input, shape index: {}]
  %s6 = inlined_call_operand.hbm [shape: f32[2,256], index: 6, kind: output, shape index: {}]
  %s7 = sld [smem:[#allocation0]]
  $region50: #{tpu_custom_call.1} parent=0
    _
  %s9 = ssub.s32 1, %s7
  %s10 = scalar_select 0, %s9, %s7
  $region1: #{tpu_custom_call.1} parent=0
    #allocation2 [shape = 'u8[2048]{0}', space=vmem, size = 0x800, scoped, tag = 'input window, operand 0, single buffered']
    #allocation3 [shape = 's32[1]{0}', space=sflag, size = 0x4, scoped, tag = 'scoped memory for tpu_custom_call.1']
    #allocation4 [shape = 's32[1]{0}', space=sflag, size = 0x4, scoped, tag = 'scoped memory for tpu_custom_call.1']
    #allocation5 [shape = 'u8[262144]{0}', space=vmem, size = 0x40000, scoped, tag = 'input window, operand 1, single buffered']
    #allocation6 [shape = 's32[1]{0}', space=sflag, size = 0x4, scoped, tag = 'scoped memory for tpu_custom_call.1']
    #allocation7 [shape = 'u8[262144]{0}', space=vmem, size = 0x40000, scoped, tag = 'input window, operand 2, single buffered']
    #allocation8 [shape = 'u8[262144]{0}', space=vmem, size = 0x40000, scoped, tag = 'input window, operand 4, single buffered']
    #allocation9 [shape = 's32[1]{0}', space=sflag, size = 0x4, scoped, tag = 'scoped memory for tpu_custom_call.1']
    #allocation10 [shape = 'u8[2048]{0}', space=vmem, size = 0x800, scoped, tag = 'output window, operand 0, single buffered']
    %11 = vsyncpa [#allocation3], 0
    %12 = vsyncpa [#allocation6], 0
    %13 = vsyncpa [#allocation9], 0
    %14 = vsyncpa [#allocation4], 0
    // Predicated region
    $region2: #{tpu_custom_call.1} parent=1 // pred_check
      _
    $region3: #{tpu_custom_call.1} parent=1 // pred_check_branch
      %16 = sbr.rel (0) target = $region5
    $region4: #{tpu_custom_call.1} parent=1 // pred_region
      %s18 = ssub.s32 64, 64
      %19 = vsyncadd [#allocation3], %s18
      %s21 = sshll.u32 [#allocation2], 4
      %s22 = int_to_ptr.vmem [resolvable:$true] %s21
      %24 = dma.hbm_to_vmem [thread:$0]  %s0, 64, %s22, [#allocation3]
    $region5: #{tpu_custom_call.1} parent=1 // pred_fallthru
      _
    // Predicated region
    $region6: #{tpu_custom_call.1} parent=1 // pred_check
      _
    $region7: #{tpu_custom_call.1} parent=1 // pred_check_branch
      %26 = sbr.rel (0) target = $region9
    $region8: #{tpu_custom_call.1} parent=1 // pred_region
      %s28 = ssub.s32 8192, 8192
      %29 = vsyncadd [#allocation6], %s28
      %s30 = sshll.u32 [#allocation5], 4
      %s31 = int_to_ptr.vmem [resolvable:$true] %s30
      %36 = dma.hbm_to_vmem [thread:$0]  %s1, 8192, %s31, [#allocation6], 256, 256, 16
    $region9: #{tpu_custom_call.1} parent=1 // pred_fallthru
      _
    // Predicated region
    $region10: #{tpu_custom_call.1} parent=1 // pred_check
      _
    $region11: #{tpu_custom_call.1} parent=1 // pred_check_branch
      %38 = sbr.rel (0) target = $region13
    $region12: #{tpu_custom_call.1} parent=1 // pred_region
      %s40 = ssub.s32 8192, 8192
      %41 = vsyncadd [#allocation6], %s40
      %s42 = sshll.u32 [#allocation7], 4
      %s43 = int_to_ptr.vmem [resolvable:$true] %s42
      %48 = dma.hbm_to_vmem [thread:$0]  %s2, 8192, %s43, [#allocation6], 256, 256, 16
    $region13: #{tpu_custom_call.1} parent=1 // pred_fallthru
      _
    // Predicated region
    $region14: #{tpu_custom_call.1} parent=1 // pred_check
      _
    $region15: #{tpu_custom_call.1} parent=1 // pred_check_branch
      %50 = sbr.rel (0) target = $region17
    $region16: #{tpu_custom_call.1} parent=1 // pred_region
      _
    $region17: #{tpu_custom_call.1} parent=1 // pred_fallthru
      _
    // Predicated region
    $region18: #{tpu_custom_call.1} parent=1 // pred_check
      _
    $region19: #{tpu_custom_call.1} parent=1 // pred_check_branch
      %52 = sbr.rel (0) target = $region21
    $region20: #{tpu_custom_call.1} parent=1 // pred_region
      %s54 = ssub.s32 8192, 8192
      %55 = vsyncadd [#allocation9], %s54
      %s56 = sshll.u32 [#allocation8], 4
      %s57 = int_to_ptr.vmem [resolvable:$true] %s56
      %62 = dma.hbm_to_vmem [thread:$0]  %s4, 8192, %s57, [#allocation9], 256, 256, 16
    $region21: #{tpu_custom_call.1} parent=1 // pred_fallthru
      _
    // Predicated region
    $region22: #{tpu_custom_call.1} parent=1 // pred_check
      _
    $region23: #{tpu_custom_call.1} parent=1 // pred_check_branch
      %64 = sbr.rel (0) target = $region25
    $region24: #{tpu_custom_call.1} parent=1 // pred_region
      _
    $region25: #{tpu_custom_call.1} parent=1 // pred_fallthru
      _
    // Predicated region
    $region26: #{tpu_custom_call.1} parent=1 // pred_check
      _
    $region27: #{tpu_custom_call.1} parent=1 // pred_check_branch
      %66 = sbr.rel (0) target = $region29
    $region28: #{tpu_custom_call.1} parent=1 // pred_region
      %67 = dma.done [#allocation3], 64
    $region29: #{tpu_custom_call.1} parent=1 // pred_fallthru
      _
    // Predicated region
    $region30: #{tpu_custom_call.1} parent=1 // pred_check
      _
    $region31: #{tpu_custom_call.1} parent=1 // pred_check_branch
      %69 = sbr.rel (0) target = $region33
    $region32: #{tpu_custom_call.1} parent=1 // pred_region
      %70 = dma.done [#allocation6], 8192
    $region33: #{tpu_custom_call.1} parent=1 // pred_fallthru
      _
    // Predicated region
    $region34: #{tpu_custom_call.1} parent=1 // pred_check
      _
    $region35: #{tpu_custom_call.1} parent=1 // pred_check_branch
      %72 = sbr.rel (0) target = $region37
    $region36: #{tpu_custom_call.1} parent=1 // pred_region
      %73 = dma.done [#allocation6], 8192
    $region37: #{tpu_custom_call.1} parent=1 // pred_fallthru
      _
    // Predicated region
    $region38: #{tpu_custom_call.1} parent=1 // pred_check
      _
    $region39: #{tpu_custom_call.1} parent=1 // pred_check_branch
      %75 = sbr.rel (0) target = $region41
    $region40: #{tpu_custom_call.1} parent=1 // pred_region
      %76 = dma.done [#allocation9], 8192
    $region41: #{tpu_custom_call.1} parent=1 // pred_fallthru
      _
    %v77 = vld [vmem:[#allocation2] sm:$0xf]
    %v78 = vld [vmem:[#allocation5] sm:$0xff]
    %v79 = vld [vmem:[#allocation5 + $0x8] sm:$0xff]
    %v80 = vld [vmem:[#allocation5 + $0x10] sm:$0xff]
    %v81 = vld [vmem:[#allocation5 + $0x18] sm:$0xff]
    %v82 = vld [vmem:[#allocation5 + $0x20] sm:$0xff]
    %v83 = vld [vmem:[#allocation5 + $0x28] sm:$0xff]
    %v84 = vld [vmem:[#allocation5 + $0x30] sm:$0xff]
    %v85 = vld [vmem:[#allocation5 + $0x38] sm:$0xff]
    %v86 = vld [vmem:[#allocation5 + $0x40] sm:$0xff]
    %v87 = vld [vmem:[#allocation5 + $0x48] sm:$0xff]
    %v88 = vld [vmem:[#allocation5 + $0x50] sm:$0xff]
    %v89 = vld [vmem:[#allocation5 + $0x58] sm:$0xff]
    %v90 = vld [vmem:[#allocation5 + $0x60] sm:$0xff]
    %v91 = vld [vmem:[#allocation5 + $0x68] sm:$0xff]
    %v92 = vld [vmem:[#allocation5 + $0x70] sm:$0xff]
    %v93 = vld [vmem:[#allocation5 + $0x78] sm:$0xff]
    %v94 = vld [vmem:[#allocation5 + $0x80] sm:$0xff]
    %v95 = vld [vmem:[#allocation5 + $0x88] sm:$0xff]
    %v96 = vld [vmem:[#allocation5 + $0x90] sm:$0xff]
    %v97 = vld [vmem:[#allocation5 + $0x98] sm:$0xff]
    %v98 = vld [vmem:[#allocation5 + $0xa0] sm:$0xff]
    %v99 = vld [vmem:[#allocation5 + $0xa8] sm:$0xff]
    %v100 = vld [vmem:[#allocation5 + $0xb0] sm:$0xff]
    %v101 = vld [vmem:[#allocation5 + $0xb8] sm:$0xff]
    %v102 = vld [vmem:[#allocation5 + $0xc0] sm:$0xff]
    %v103 = vld [vmem:[#allocation5 + $0xc8] sm:$0xff]
    %v104 = vld [vmem:[#allocation5 + $0xd0] sm:$0xff]
    %v105 = vld [vmem:[#allocation5 + $0xd8] sm:$0xff]
    %v106 = vld [vmem:[#allocation5 + $0xe0] sm:$0xff]
    %v107 = vld [vmem:[#allocation5 + $0xe8] sm:$0xff]
    %v108 = vld [vmem:[#allocation5 + $0xf0] sm:$0xff]
    %v109 = vld [vmem:[#allocation5 + $0xf8] sm:$0xff]
    %v110 = vld [vmem:[#allocation5 + $0x100] sm:$0xff]
    %v111 = vld [vmem:[#allocation5 + $0x108] sm:$0xff]
    %v112 = vld [vmem:[#allocation5 + $0x110] sm:$0xff]
    %v113 = vld [vmem:[#allocation5 + $0x118] sm:$0xff]
    %v114 = vld [vmem:[#allocation5 + $0x120] sm:$0xff]
    %v115 = vld [vmem:[#allocation5 + $0x128] sm:$0xff]
    %v116 = vld [vmem:[#allocation5 + $0x130] sm:$0xff]
    %v117 = vld [vmem:[#allocation5 + $0x138] sm:$0xff]
    %v118 = vld [vmem:[#allocation5 + $0x140] sm:$0xff]
    %v119 = vld [vmem:[#allocation5 + $0x148] sm:$0xff]
    %v120 = vld [vmem:[#allocation5 + $0x150] sm:$0xff]
    %v121 = vld [vmem:[#allocation5 + $0x158] sm:$0xff]
    %v122 = vld [vmem:[#allocation5 + $0x160] sm:$0xff]
    %v123 = vld [vmem:[#allocation5 + $0x168] sm:$0xff]
    %v124 = vld [vmem:[#allocation5 + $0x170] sm:$0xff]
    %v125 = vld [vmem:[#allocation5 + $0x178] sm:$0xff]
    %v126 = vld [vmem:[#allocation5 + $0x180] sm:$0xff]
    %v127 = vld [vmem:[#allocation5 + $0x188] sm:$0xff]
    %v128 = vld [vmem:[#allocation5 + $0x190] sm:$0xff]
    %v129 = vld [vmem:[#allocation5 + $0x198] sm:$0xff]
    %v130 = vld [vmem:[#allocation5 + $0x1a0] sm:$0xff]
    %v131 = vld [vmem:[#allocation5 + $0x1a8] sm:$0xff]
    %v132 = vld [vmem:[#allocation5 + $0x1b0] sm:$0xff]
    %v133 = vld [vmem:[#allocation5 + $0x1b8] sm:$0xff]
    %v134 = vld [vmem:[#allocation5 + $0x1c0] sm:$0xff]
    %v135 = vld [vmem:[#allocation5 + $0x1c8] sm:$0xff]
    %v136 = vld [vmem:[#allocation5 + $0x1d0] sm:$0xff]
    %v137 = vld [vmem:[#allocation5 + $0x1d8] sm:$0xff]
    %v138 = vld [vmem:[#allocation5 + $0x1e0] sm:$0xff]
    %v139 = vld [vmem:[#allocation5 + $0x1e8] sm:$0xff]
    %v140 = vld [vmem:[#allocation5 + $0x1f0] sm:$0xff]
    %v141 = vld [vmem:[#allocation5 + $0x1f8] sm:$0xff]
    %v144 = vunpack.c.l.s4 1983009808
    %v145 = vunpack.c.0.s8 %v144
    %v146 = vlaneseq
    %v147 = vshrl.u32 %v146, 7
    %v148 = vsub.s32 %v145, %v147
    %v149 = vrot.slane %v77, %v148
    %v150 = vcombine.high %v149, %v149
    %153 = vmatprep.subr.mxu0 %v79
    %154 = vmatpush1.msra.mxu0 %v78
    %155 = vmatprep.subr.mxu0 %v81
    %156 = vmatpush1.msra.mxu0 %v80
    %157 = vmatprep.subr.mxu0 %v83
    %158 = vmatpush1.msra.mxu0 %v82
    %159 = vmatprep.subr.mxu0 %v85
    %160 = vmatpush1.msra.mxu0 %v84
    %161 = vmatprep.subr.mxu0 %v87
    %162 = vmatpush1.msra.mxu0 %v86
    %163 = vmatprep.subr.mxu0 %v89
    %164 = vmatpush1.msra.mxu0 %v88
    %165 = vmatprep.subr.mxu0 %v91
    %166 = vmatpush1.msra.mxu0 %v90
    %167 = vmatprep.subr.mxu0 %v93
    %168 = vmatpush1.msra.mxu0 %v92
    %169 = vmatprep.subr.mxu0 %v95
    %170 = vmatpush1.msra.mxu0 %v94
    %171 = vmatprep.subr.mxu0 %v97
    %172 = vmatpush1.msra.mxu0 %v96
    %173 = vmatprep.subr.mxu0 %v99
    %174 = vmatpush1.msra.mxu0 %v98
    %175 = vmatprep.subr.mxu0 %v101
    %176 = vmatpush1.msra.mxu0 %v100
    %177 = vmatprep.subr.mxu0 %v103
    %178 = vmatpush1.msra.mxu0 %v102
    %179 = vmatprep.subr.mxu0 %v105
    %180 = vmatpush1.msra.mxu0 %v104
    %181 = vmatprep.subr.mxu0 %v107
    %182 = vmatpush1.msra.mxu0 %v106
    %183 = vmatprep.subr.mxu0 %v109
    %184 = vmatpush1.msra.mxu0 %v108
    %185 = vmatprep.subr.mxu0 %v111
    %186 = vmatpush1.msra.mxu0 %v110
    %187 = vmatprep.subr.mxu0 %v113
    %188 = vmatpush1.msra.mxu0 %v112
    %189 = vmatprep.subr.mxu0 %v115
    %190 = vmatpush1.msra.mxu0 %v114
    %191 = vmatprep.subr.mxu0 %v117
    %192 = vmatpush1.msra.mxu0 %v116
    %193 = vmatprep.subr.mxu0 %v119
    %194 = vmatpush1.msra.mxu0 %v118
    %195 = vmatprep.subr.mxu0 %v121
    %196 = vmatpush1.msra.mxu0 %v120
    %197 = vmatprep.subr.mxu0 %v123
    %198 = vmatpush1.msra.mxu0 %v122
    %199 = vmatprep.subr.mxu0 %v125
    %200 = vmatpush1.msra.mxu0 %v124
    %201 = vmatprep.subr.mxu0 %v127
    %202 = vmatpush1.msra.mxu0 %v126
    %203 = vmatprep.subr.mxu0 %v129
    %204 = vmatpush1.msra.mxu0 %v128
    %205 = vmatprep.subr.mxu0 %v131
    %206 = vmatpush1.msra.mxu0 %v130
    %207 = vmatprep.subr.mxu0 %v133
    %208 = vmatpush1.msra.mxu0 %v132
    %209 = vmatprep.subr.mxu0 %v135
    %210 = vmatpush1.msra.mxu0 %v134
    %211 = vmatprep.subr.mxu0 %v137
    %212 = vmatpush1.msra.mxu0 %v136
    %213 = vmatprep.subr.mxu0 %v139
    %214 = vmatpush1.msra.mxu0 %v138
    %215 = vmatprep.subr.mxu0 %v141
    %216 = vmatpush1.msra.mxu0 %v140
    %217 = vmatprep.mubr.f32.mxu0 %v150
    %218 = vmatmul.mubr.f32.gmra.mrb[0].mxu0 %v149
    %v219 = vpop.f32.mrb[0].mxu0
    %v220 = vadd.f32 0.0, %v219
    %v221 = vpop.f32.mrb[0].mxu0
    %v222 = vadd.f32 0.0, %v221
    %223 = vdwg.mxu0
    %v226 = vcombine.low %v220, %v222
    %v228 = vunpack.c.l.s4 1983009808
    %v229 = vunpack.c.0.s8 %v228
    %v230 = vlaneseq
    %v231 = vshrl.u32 %v230, 7
    %v232 = vsub.s32 %v229, %v231
    %v233 = vrot.slane %v226, %v232
    %v235 = vsub.f32 %v77, %v233
    %v236 = vmul.f32 %v235, %v235
    %v239 = vunpack.c.l.s4 1983009808
    %v240 = vunpack.c.0.s8 %v239
    %v241 = vlaneseq
    %v242 = vshrl.u32 %v241, 7
    %v243 = vsub.s32 %v240, %v242
    %v244 = vrot.slane %v236, %v243
    %v245 = vcombine.high %v244, %v244
    %248 = vmatprep.subr.mxu0 %v79
    %249 = vmatpush1.msra.mxu0 %v78
    %250 = vmatprep.subr.mxu0 %v81
    %251 = vmatpush1.msra.mxu0 %v80
    %252 = vmatprep.subr.mxu0 %v83
    %253 = vmatpush1.msra.mxu0 %v82
    %254 = vmatprep.subr.mxu0 %v85
    %255 = vmatpush1.msra.mxu0 %v84
    %256 = vmatprep.subr.mxu0 %v87
    %257 = vmatpush1.msra.mxu0 %v86
    %258 = vmatprep.subr.mxu0 %v89
    %259 = vmatpush1.msra.mxu0 %v88
    %260 = vmatprep.subr.mxu0 %v91
    %261 = vmatpush1.msra.mxu0 %v90
    %262 = vmatprep.subr.mxu0 %v93
    %263 = vmatpush1.msra.mxu0 %v92
    %264 = vmatprep.subr.mxu0 %v95
    %265 = vmatpush1.msra.mxu0 %v94
    %266 = vmatprep.subr.mxu0 %v97
    %267 = vmatpush1.msra.mxu0 %v96
    %268 = vmatprep.subr.mxu0 %v99
    %269 = vmatpush1.msra.mxu0 %v98
    %270 = vmatprep.subr.mxu0 %v101
    %271 = vmatpush1.msra.mxu0 %v100
    %272 = vmatprep.subr.mxu0 %v103
    %273 = vmatpush1.msra.mxu0 %v102
    %274 = vmatprep.subr.mxu0 %v105
    %275 = vmatpush1.msra.mxu0 %v104
    %276 = vmatprep.subr.mxu0 %v107
    %277 = vmatpush1.msra.mxu0 %v106
    %278 = vmatprep.subr.mxu0 %v109
    %279 = vmatpush1.msra.mxu0 %v108
    %280 = vmatprep.subr.mxu0 %v111
    %281 = vmatpush1.msra.mxu0 %v110
    %282 = vmatprep.subr.mxu0 %v113
    %283 = vmatpush1.msra.mxu0 %v112
    %284 = vmatprep.subr.mxu0 %v115
    %285 = vmatpush1.msra.mxu0 %v114
    %286 = vmatprep.subr.mxu0 %v117
    %287 = vmatpush1.msra.mxu0 %v116
    %288 = vmatprep.subr.mxu0 %v119
    %289 = vmatpush1.msra.mxu0 %v118
    %290 = vmatprep.subr.mxu0 %v121
    %291 = vmatpush1.msra.mxu0 %v120
    %292 = vmatprep.subr.mxu0 %v123
    %293 = vmatpush1.msra.mxu0 %v122
    %294 = vmatprep.subr.mxu0 %v125
    %295 = vmatpush1.msra.mxu0 %v124
    %296 = vmatprep.subr.mxu0 %v127
    %297 = vmatpush1.msra.mxu0 %v126
    %298 = vmatprep.subr.mxu0 %v129
    %299 = vmatpush1.msra.mxu0 %v128
    %300 = vmatprep.subr.mxu0 %v131
    %301 = vmatpush1.msra.mxu0 %v130
    %302 = vmatprep.subr.mxu0 %v133
    %303 = vmatpush1.msra.mxu0 %v132
    %304 = vmatprep.subr.mxu0 %v135
    %305 = vmatpush1.msra.mxu0 %v134
    %306 = vmatprep.subr.mxu0 %v137
    %307 = vmatpush1.msra.mxu0 %v136
    %308 = vmatprep.subr.mxu0 %v139
    %309 = vmatpush1.msra.mxu0 %v138
    %310 = vmatprep.subr.mxu0 %v141
    %311 = vmatpush1.msra.mxu0 %v140
    %312 = vmatprep.mubr.f32.mxu0 %v245
    %313 = vmatmul.mubr.f32.gmra.mrb[0].mxu0 %v244
    %v314 = vpop.f32.mrb[0].mxu0
    %v315 = vadd.f32 1e-05, %v314
    %v316 = vpop.f32.mrb[0].mxu0
    %v317 = vadd.f32 1e-05, %v316
    %318 = vdwg.mxu0
    %v319 = vrsqrt.pop %v315
    %v320 = vrsqrt.pop %v317
    %v323 = vcombine.low %v319, %v320
    %v325 = vunpack.c.l.s4 1983009808
    %v326 = vunpack.c.0.s8 %v325
    %v327 = vlaneseq
    %v328 = vshrl.u32 %v327, 7
    %v329 = vsub.s32 %v326, %v328
    %v330 = vrot.slane %v323, %v329
    %v332 = vmul.f32 %v235, %v330
    %v333 = vld [vmem:[#allocation7] sm:$0xff]
    %v334 = vld [vmem:[#allocation7 + $0x8] sm:$0xff]
    %v335 = vld [vmem:[#allocation7 + $0x10] sm:$0xff]
    %v336 = vld [vmem:[#allocation7 + $0x18] sm:$0xff]
    %v337 = vld [vmem:[#allocation7 + $0x20] sm:$0xff]
    %v338 = vld [vmem:[#allocation7 + $0x28] sm:$0xff]
    %v339 = vld [vmem:[#allocation7 + $0x30] sm:$0xff]
    %v340 = vld [vmem:[#allocation7 + $0x38] sm:$0xff]
    %v341 = vld [vmem:[#allocation7 + $0x40] sm:$0xff]
    %v342 = vld [vmem:[#allocation7 + $0x48] sm:$0xff]
    %v343 = vld [vmem:[#allocation7 + $0x50] sm:$0xff]
    %v344 = vld [vmem:[#allocation7 + $0x58] sm:$0xff]
    %v345 = vld [vmem:[#allocation7 + $0x60] sm:$0xff]
    %v346 = vld [vmem:[#allocation7 + $0x68] sm:$0xff]
    %v347 = vld [vmem:[#allocation7 + $0x70] sm:$0xff]
    %v348 = vld [vmem:[#allocation7 + $0x78] sm:$0xff]
    %v349 = vld [vmem:[#allocation7 + $0x80] sm:$0xff]
    %v350 = vld [vmem:[#allocation7 + $0x88] sm:$0xff]
    %v351 = vld [vmem:[#allocation7 + $0x90] sm:$0xff]
    %v352 = vld [vmem:[#allocation7 + $0x98] sm:$0xff]
    %v353 = vld [vmem:[#allocation7 + $0xa0] sm:$0xff]
    %v354 = vld [vmem:[#allocation7 + $0xa8] sm:$0xff]
    %v355 = vld [vmem:[#allocation7 + $0xb0] sm:$0xff]
    %v356 = vld [vmem:[#allocation7 + $0xb8] sm:$0xff]
    %v357 = vld [vmem:[#allocation7 + $0xc0] sm:$0xff]
    %v358 = vld [vmem:[#allocation7 + $0xc8] sm:$0xff]
    %v359 = vld [vmem:[#allocation7 + $0xd0] sm:$0xff]
    %v360 = vld [vmem:[#allocation7 + $0xd8] sm:$0xff]
    %v361 = vld [vmem:[#allocation7 + $0xe0] sm:$0xff]
    %v362 = vld [vmem:[#allocation7 + $0xe8] sm:$0xff]
    %v363 = vld [vmem:[#allocation7 + $0xf0] sm:$0xff]
    %v364 = vld [vmem:[#allocation7 + $0xf8] sm:$0xff]
    %v365 = vld [vmem:[#allocation7 + $0x100] sm:$0xff]
    %v366 = vld [vmem:[#allocation7 + $0x108] sm:$0xff]
    %v367 = vld [vmem:[#allocation7 + $0x110] sm:$0xff]
    %v368 = vld [vmem:[#allocation7 + $0x118] sm:$0xff]
    %v369 = vld [vmem:[#allocation7 + $0x120] sm:$0xff]
    %v370 = vld [vmem:[#allocation7 + $0x128] sm:$0xff]
    %v371 = vld [vmem:[#allocation7 + $0x130] sm:$0xff]
    %v372 = vld [vmem:[#allocation7 + $0x138] sm:$0xff]
    %v373 = vld [vmem:[#allocation7 + $0x140] sm:$0xff]
    %v374 = vld [vmem:[#allocation7 + $0x148] sm:$0xff]
    %v375 = vld [vmem:[#allocation7 + $0x150] sm:$0xff]
    %v376 = vld [vmem:[#allocation7 + $0x158] sm:$0xff]
    %v377 = vld [vmem:[#allocation7 + $0x160] sm:$0xff]
    %v378 = vld [vmem:[#allocation7 + $0x168] sm:$0xff]
    %v379 = vld [vmem:[#allocation7 + $0x170] sm:$0xff]
    %v380 = vld [vmem:[#allocation7 + $0x178] sm:$0xff]
    %v381 = vld [vmem:[#allocation7 + $0x180] sm:$0xff]
    %v382 = vld [vmem:[#allocation7 + $0x188] sm:$0xff]
    %v383 = vld [vmem:[#allocation7 + $0x190] sm:$0xff]
    %v384 = vld [vmem:[#allocation7 + $0x198] sm:$0xff]
    %v385 = vld [vmem:[#allocation7 + $0x1a0] sm:$0xff]
    %v386 = vld [vmem:[#allocation7 + $0x1a8] sm:$0xff]
    %v387 = vld [vmem:[#allocation7 + $0x1b0] sm:$0xff]
    %v388 = vld [vmem:[#allocation7 + $0x1b8] sm:$0xff]
    %v389 = vld [vmem:[#allocation7 + $0x1c0] sm:$0xff]
    %v390 = vld [vmem:[#allocation7 + $0x1c8] sm:$0xff]
    %v391 = vld [vmem:[#allocation7 + $0x1d0] sm:$0xff]
    %v392 = vld [vmem:[#allocation7 + $0x1d8] sm:$0xff]
    %v393 = vld [vmem:[#allocation7 + $0x1e0] sm:$0xff]
    %v394 = vld [vmem:[#allocation7 + $0x1e8] sm:$0xff]
    %v395 = vld [vmem:[#allocation7 + $0x1f0] sm:$0xff]
    %v396 = vld [vmem:[#allocation7 + $0x1f8] sm:$0xff]
    %v397 = vld [vmem:[%s3] sm:$0x3]
    %v399 = vlaneseq
    %v400 = vshrl.u32 %v399, 7
    %v401 = vsub.s32 0, %v400
    %v402 = vrot.slane %v397, %v401
    %v403 = vlaneseq
    %v404 = vshrl.u32 %v403, 7
    %v405 = vsub.s32 1, %v404
    %v406 = vrot.slane %v397, %v405
    %v411 = vunpack.c.l.s4 1983009808
    %v412 = vunpack.c.0.s8 %v411
    %v413 = vlaneseq
    %v414 = vshrl.u32 %v413, 7
    %v415 = vsub.s32 %v412, %v414
    %v416 = vrot.slane %v332, %v415
    %v417 = vcombine.high %v416, %v416
    %420 = vmatprep.subr.mxu0 %v334
    %421 = vmatpush1.msra.mxu0 %v333
    %422 = vmatprep.subr.mxu0 %v336
    %423 = vmatpush1.msra.mxu0 %v335
    %424 = vmatprep.subr.mxu0 %v338
    %425 = vmatpush1.msra.mxu0 %v337
    %426 = vmatprep.subr.mxu0 %v340
    %427 = vmatpush1.msra.mxu0 %v339
    %428 = vmatprep.subr.mxu0 %v342
    %429 = vmatpush1.msra.mxu0 %v341
    %430 = vmatprep.subr.mxu0 %v344
    %431 = vmatpush1.msra.mxu0 %v343
    %432 = vmatprep.subr.mxu0 %v346
    %433 = vmatpush1.msra.mxu0 %v345
    %434 = vmatprep.subr.mxu0 %v348
    %435 = vmatpush1.msra.mxu0 %v347
    %436 = vmatprep.subr.mxu0 %v350
    %437 = vmatpush1.msra.mxu0 %v349
    %438 = vmatprep.subr.mxu0 %v352
    %439 = vmatpush1.msra.mxu0 %v351
    %440 = vmatprep.subr.mxu0 %v354
    %441 = vmatpush1.msra.mxu0 %v353
    %442 = vmatprep.subr.mxu0 %v356
    %443 = vmatpush1.msra.mxu0 %v355
    %444 = vmatprep.subr.mxu0 %v358
    %445 = vmatpush1.msra.mxu0 %v357
    %446 = vmatprep.subr.mxu0 %v360
    %447 = vmatpush1.msra.mxu0 %v359
    %448 = vmatprep.subr.mxu0 %v362
    %449 = vmatpush1.msra.mxu0 %v361
    %450 = vmatprep.subr.mxu0 %v364
    %451 = vmatpush1.msra.mxu0 %v363
    %452 = vmatprep.subr.mxu0 %v366
    %453 = vmatpush1.msra.mxu0 %v365
    %454 = vmatprep.subr.mxu0 %v368
    %455 = vmatpush1.msra.mxu0 %v367
    %456 = vmatprep.subr.mxu0 %v370
    %457 = vmatpush1.msra.mxu0 %v369
    %458 = vmatprep.subr.mxu0 %v372
    %459 = vmatpush1.msra.mxu0 %v371
    %460 = vmatprep.subr.mxu0 %v374
    %461 = vmatpush1.msra.mxu0 %v373
    %462 = vmatprep.subr.mxu0 %v376
    %463 = vmatpush1.msra.mxu0 %v375
    %464 = vmatprep.subr.mxu0 %v378
    %465 = vmatpush1.msra.mxu0 %v377
    %466 = vmatprep.subr.mxu0 %v380
    %467 = vmatpush1.msra.mxu0 %v379
    %468 = vmatprep.subr.mxu0 %v382
    %469 = vmatpush1.msra.mxu0 %v381
    %470 = vmatprep.subr.mxu0 %v384
    %471 = vmatpush1.msra.mxu0 %v383
    %472 = vmatprep.subr.mxu0 %v386
    %473 = vmatpush1.msra.mxu0 %v385
    %474 = vmatprep.subr.mxu0 %v388
    %475 = vmatpush1.msra.mxu0 %v387
    %476 = vmatprep.subr.mxu0 %v390
    %477 = vmatpush1.msra.mxu0 %v389
    %478 = vmatprep.subr.mxu0 %v392
    %479 = vmatpush1.msra.mxu0 %v391
    %480 = vmatprep.subr.mxu0 %v394
    %481 = vmatpush1.msra.mxu0 %v393
    %482 = vmatprep.subr.mxu0 %v396
    %483 = vmatpush1.msra.mxu0 %v395
    %484 = vmatprep.mubr.f32.mxu0 %v417
    %485 = vmatmul.mubr.f32.gmra.mrb[0].mxu0 %v416
    %v486 = vpop.f32.mrb[0].mxu0
    %v487 = vadd.f32 %v402, %v486
    %v488 = vpop.f32.mrb[0].mxu0
    %v489 = vadd.f32 %v406, %v488
    %490 = vdwg.mxu0
    %vm491 = vcmp.gt.f32.partialorder %v487, 0.0
    %vm492 = vcmp.gt.f32.partialorder %v489, 0.0
    %v493 = vmul.f32 %v487, 0.1
    %v494 = vmul.f32 %v489, 0.1
    %v495 = vsel %vm491, %v487, %v493
    %v496 = vsel %vm492, %v489, %v494
    %v497 = vld [vmem:[#allocation8] sm:$0xff]
    %v498 = vld [vmem:[#allocation8 + $0x8] sm:$0xff]
    %v499 = vld [vmem:[#allocation8 + $0x10] sm:$0xff]
    %v500 = vld [vmem:[#allocation8 + $0x18] sm:$0xff]
    %v501 = vld [vmem:[#allocation8 + $0x20] sm:$0xff]
    %v502 = vld [vmem:[#allocation8 + $0x28] sm:$0xff]
    %v503 = vld [vmem:[#allocation8 + $0x30] sm:$0xff]
    %v504 = vld [vmem:[#allocation8 + $0x38] sm:$0xff]
    %v505 = vld [vmem:[#allocation8 + $0x40] sm:$0xff]
    %v506 = vld [vmem:[#allocation8 + $0x48] sm:$0xff]
    %v507 = vld [vmem:[#allocation8 + $0x50] sm:$0xff]
    %v508 = vld [vmem:[#allocation8 + $0x58] sm:$0xff]
    %v509 = vld [vmem:[#allocation8 + $0x60] sm:$0xff]
    %v510 = vld [vmem:[#allocation8 + $0x68] sm:$0xff]
    %v511 = vld [vmem:[#allocation8 + $0x70] sm:$0xff]
    %v512 = vld [vmem:[#allocation8 + $0x78] sm:$0xff]
    %v513 = vld [vmem:[#allocation8 + $0x80] sm:$0xff]
    %v514 = vld [vmem:[#allocation8 + $0x88] sm:$0xff]
    %v515 = vld [vmem:[#allocation8 + $0x90] sm:$0xff]
    %v516 = vld [vmem:[#allocation8 + $0x98] sm:$0xff]
    %v517 = vld [vmem:[#allocation8 + $0xa0] sm:$0xff]
    %v518 = vld [vmem:[#allocation8 + $0xa8] sm:$0xff]
    %v519 = vld [vmem:[#allocation8 + $0xb0] sm:$0xff]
    %v520 = vld [vmem:[#allocation8 + $0xb8] sm:$0xff]
    %v521 = vld [vmem:[#allocation8 + $0xc0] sm:$0xff]
    %v522 = vld [vmem:[#allocation8 + $0xc8] sm:$0xff]
    %v523 = vld [vmem:[#allocation8 + $0xd0] sm:$0xff]
    %v524 = vld [vmem:[#allocation8 + $0xd8] sm:$0xff]
    %v525 = vld [vmem:[#allocation8 + $0xe0] sm:$0xff]
    %v526 = vld [vmem:[#allocation8 + $0xe8] sm:$0xff]
    %v527 = vld [vmem:[#allocation8 + $0xf0] sm:$0xff]
    %v528 = vld [vmem:[#allocation8 + $0xf8] sm:$0xff]
    %v529 = vld [vmem:[#allocation8 + $0x100] sm:$0xff]
    %v530 = vld [vmem:[#allocation8 + $0x108] sm:$0xff]
    %v531 = vld [vmem:[#allocation8 + $0x110] sm:$0xff]
    %v532 = vld [vmem:[#allocation8 + $0x118] sm:$0xff]
    %v533 = vld [vmem:[#allocation8 + $0x120] sm:$0xff]
    %v534 = vld [vmem:[#allocation8 + $0x128] sm:$0xff]
    %v535 = vld [vmem:[#allocation8 + $0x130] sm:$0xff]
    %v536 = vld [vmem:[#allocation8 + $0x138] sm:$0xff]
    %v537 = vld [vmem:[#allocation8 + $0x140] sm:$0xff]
    %v538 = vld [vmem:[#allocation8 + $0x148] sm:$0xff]
    %v539 = vld [vmem:[#allocation8 + $0x150] sm:$0xff]
    %v540 = vld [vmem:[#allocation8 + $0x158] sm:$0xff]
    %v541 = vld [vmem:[#allocation8 + $0x160] sm:$0xff]
    %v542 = vld [vmem:[#allocation8 + $0x168] sm:$0xff]
    %v543 = vld [vmem:[#allocation8 + $0x170] sm:$0xff]
    %v544 = vld [vmem:[#allocation8 + $0x178] sm:$0xff]
    %v545 = vld [vmem:[#allocation8 + $0x180] sm:$0xff]
    %v546 = vld [vmem:[#allocation8 + $0x188] sm:$0xff]
    %v547 = vld [vmem:[#allocation8 + $0x190] sm:$0xff]
    %v548 = vld [vmem:[#allocation8 + $0x198] sm:$0xff]
    %v549 = vld [vmem:[#allocation8 + $0x1a0] sm:$0xff]
    %v550 = vld [vmem:[#allocation8 + $0x1a8] sm:$0xff]
    %v551 = vld [vmem:[#allocation8 + $0x1b0] sm:$0xff]
    %v552 = vld [vmem:[#allocation8 + $0x1b8] sm:$0xff]
    %v553 = vld [vmem:[#allocation8 + $0x1c0] sm:$0xff]
    %v554 = vld [vmem:[#allocation8 + $0x1c8] sm:$0xff]
    %v555 = vld [vmem:[#allocation8 + $0x1d0] sm:$0xff]
    %v556 = vld [vmem:[#allocation8 + $0x1d8] sm:$0xff]
    %v557 = vld [vmem:[#allocation8 + $0x1e0] sm:$0xff]
    %v558 = vld [vmem:[#allocation8 + $0x1e8] sm:$0xff]
    %v559 = vld [vmem:[#allocation8 + $0x1f0] sm:$0xff]
    %v560 = vld [vmem:[#allocation8 + $0x1f8] sm:$0xff]
    %v561 = vld [vmem:[%s5] sm:$0x3]
    %v563 = vlaneseq
    %v564 = vshrl.u32 %v563, 7
    %v565 = vsub.s32 0, %v564
    %v566 = vrot.slane %v561, %v565
    %v567 = vlaneseq
    %v568 = vshrl.u32 %v567, 7
    %v569 = vsub.s32 1, %v568
    %v570 = vrot.slane %v561, %v569
    %573 = vmatprep.subr.mxu0 %v498
    %574 = vmatpush1.msra.mxu0 %v497
    %575 = vmatprep.subr.mxu0 %v500
    %576 = vmatpush1.msra.mxu0 %v499
    %577 = vmatprep.subr.mxu0 %v502
    %578 = vmatpush1.msra.mxu0 %v501
    %579 = vmatprep.subr.mxu0 %v504
    %580 = vmatpush1.msra.mxu0 %v503
    %581 = vmatprep.subr.mxu0 %v506
    %582 = vmatpush1.msra.mxu0 %v505
    %583 = vmatprep.subr.mxu0 %v508
    %584 = vmatpush1.msra.mxu0 %v507
    %585 = vmatprep.subr.mxu0 %v510
    %586 = vmatpush1.msra.mxu0 %v509
    %587 = vmatprep.subr.mxu0 %v512
    %588 = vmatpush1.msra.mxu0 %v511
    %589 = vmatprep.subr.mxu0 %v514
    %590 = vmatpush1.msra.mxu0 %v513
    %591 = vmatprep.subr.mxu0 %v516
    %592 = vmatpush1.msra.mxu0 %v515
    %593 = vmatprep.subr.mxu0 %v518
    %594 = vmatpush1.msra.mxu0 %v517
    %595 = vmatprep.subr.mxu0 %v520
    %596 = vmatpush1.msra.mxu0 %v519
    %597 = vmatprep.subr.mxu0 %v522
    %598 = vmatpush1.msra.mxu0 %v521
    %599 = vmatprep.subr.mxu0 %v524
    %600 = vmatpush1.msra.mxu0 %v523
    %601 = vmatprep.subr.mxu0 %v526
    %602 = vmatpush1.msra.mxu0 %v525
    %603 = vmatprep.subr.mxu0 %v528
    %604 = vmatpush1.msra.mxu0 %v527
    %605 = vmatprep.subr.mxu0 %v530
    %606 = vmatpush1.msra.mxu0 %v529
    %607 = vmatprep.subr.mxu0 %v532
    %608 = vmatpush1.msra.mxu0 %v531
    %609 = vmatprep.subr.mxu0 %v534
    %610 = vmatpush1.msra.mxu0 %v533
    %611 = vmatprep.subr.mxu0 %v536
    %612 = vmatpush1.msra.mxu0 %v535
    %613 = vmatprep.subr.mxu0 %v538
    %614 = vmatpush1.msra.mxu0 %v537
    %615 = vmatprep.subr.mxu0 %v540
    %616 = vmatpush1.msra.mxu0 %v539
    %617 = vmatprep.subr.mxu0 %v542
    %618 = vmatpush1.msra.mxu0 %v541
    %619 = vmatprep.subr.mxu0 %v544
    %620 = vmatpush1.msra.mxu0 %v543
    %621 = vmatprep.subr.mxu0 %v546
    %622 = vmatpush1.msra.mxu0 %v545
    %623 = vmatprep.subr.mxu0 %v548
    %624 = vmatpush1.msra.mxu0 %v547
    %625 = vmatprep.subr.mxu0 %v550
    %626 = vmatpush1.msra.mxu0 %v549
    %627 = vmatprep.subr.mxu0 %v552
    %628 = vmatpush1.msra.mxu0 %v551
    %629 = vmatprep.subr.mxu0 %v554
    %630 = vmatpush1.msra.mxu0 %v553
    %631 = vmatprep.subr.mxu0 %v556
    %632 = vmatpush1.msra.mxu0 %v555
    %633 = vmatprep.subr.mxu0 %v558
    %634 = vmatpush1.msra.mxu0 %v557
    %635 = vmatprep.subr.mxu0 %v560
    %636 = vmatpush1.msra.mxu0 %v559
    %637 = vmatprep.mubr.f32.mxu0 %v496
    %638 = vmatmul.mubr.f32.gmra.mrb[0].mxu0 %v495
    %v639 = vpop.f32.mrb[0].mxu0
    %v640 = vadd.f32 %v566, %v639
    %v641 = vpop.f32.mrb[0].mxu0
    %v642 = vadd.f32 %v570, %v641
    %643 = vdwg.mxu0
    %vm644 = vcmp.gt.f32.partialorder %v640, 0.0
    %vm645 = vcmp.gt.f32.partialorder %v642, 0.0
    %v646 = vmul.f32 %v640, 0.1
    %v647 = vmul.f32 %v642, 0.1
    %v648 = vsel %vm644, %v640, %v646
    %v649 = vsel %vm645, %v642, %v647
    %v650 = vadd.f32 %v648, %v149
    %v651 = vadd.f32 %v649, %v150
    %v654 = vcombine.low %v650, %v651
    %v656 = vunpack.c.l.s4 1983009808
    %v657 = vunpack.c.0.s8 %v656
    %v658 = vlaneseq
    %v659 = vshrl.u32 %v658, 7
    %v660 = vsub.s32 %v657, %v659
    %v661 = vrot.slane %v654, %v660
    %663 = vst [vmem:[#allocation10] sm:$0xf] %v661
    // Predicated region
    $region42: #{tpu_custom_call.1} parent=1 // pred_check
      _
    $region43: #{tpu_custom_call.1} parent=1 // pred_check_branch
      %665 = sbr.rel (0) target = $region45
    $region44: #{tpu_custom_call.1} parent=1 // pred_region
      %s667 = ssub.s32 64, 64
      %668 = vsyncadd [#allocation4], %s667
      %s670 = sshll.u32 [#allocation10], 4
      %s671 = int_to_ptr.vmem [resolvable:$true] %s670
      %673 = dma.vmem_to_hbm [thread:$0]  %s671, 64, %s6, [#allocation4]
    $region45: #{tpu_custom_call.1} parent=1 // pred_fallthru
      _
    // Predicated region
    $region46: #{tpu_custom_call.1} parent=1 // pred_check
      _
    $region47: #{tpu_custom_call.1} parent=1 // pred_check_branch
      %675 = sbr.rel (0) target = $region49
    $region48: #{tpu_custom_call.1} parent=1 // pred_region
      %676 = dma.done [#allocation4], 64
    $region49: #{tpu_custom_call.1} parent=1 // pred_fallthru
      _
    %677 = vsyncpa [#allocation3], 1
    %678 = vsyncpa [#allocation6], 1
    %679 = vsyncpa [#allocation9], 1
    %680 = vsyncpa [#allocation4], 1

</llo_original>
